<compile_context>
chip_gen: v5e
topology: v5e:2x2
jax: 0.10.0
libtpu: 0.0.40
codegen_flags: <defaults>
</compile_context>

<pallas_src>
import math

import jax
import jax.numpy as jnp
from jax.experimental import pallas as pl
from jax.experimental.pallas import tpu as pltpu


# ----------------------------------------------------------------------------
# Kernel: fused Q-projection + online-softmax cross attention
# ----------------------------------------------------------------------------
def _flash_cross_attn_kernel(y_ref, k_ref, v_ref, wq_ref, bq_ref, bo_ref,
                             o_ref, q_scr, m_scr, l_scr, acc_scr):
    """Grid = (num_query_tiles ["parallel"], num_key_tiles ["arbitrary"]).

    y_ref  : (N, tq, E)  query-source tile, batch-major, compute dtype
    k_ref  : (N, tk, E)  pre-projected keys   K  = x @ (W1·Wk) + bk
    v_ref  : (N, tk, E)  pre-projected values V' = x @ (W1·Wv·Wout) + bvo
    wq_ref : (E, E)      fused (W2·Wq)·(1/sqrt(E))
    bq_ref : (1, E) f32  fused, scaled query bias
    bo_ref : (1, E) f32  out_proj bias
    o_ref  : (N, tq, E)  output tile (written on the last key step)
    q_scr  : (N, tq, E)  projected queries (compute dtype)
    m_scr  : (N, tq, 1) f32   running max
    l_scr  : (N, tq, 1) f32   running softmax normalizer
    acc_scr: (N, tq, E) f32   running un-normalized context
    """
    f32 = jnp.float32
    kj = pl.program_id(1)

    @pl.when(kj == 0)
    def _init():
        # Q projection fused in-kernel; scale already folded into wq/bq.
        q = jnp.einsum('nqe,ef->nqf', y_ref[...], wq_ref[...],
                       preferred_element_type=f32) + bq_ref[...]
        q_scr[...] = q.astype(q_scr.dtype)
        m_scr[...] = jnp.full_like(m_scr, -jnp.inf)
        l_scr[...] = jnp.zeros_like(l_scr)
        acc_scr[...] = jnp.zeros_like(acc_scr)

    # Scores for this key tile only: (N, tq, tk); full (N, tq, Lx) never built.
    s = jnp.einsum('nqe,nke->nqk', q_scr[...], k_ref[...],
                   preferred_element_type=f32)

    m_prev = m_scr[...]
    m_new = jnp.maximum(m_prev, jnp.max(s, axis=-1, keepdims=True))
    alpha = jnp.exp(m_prev - m_new)
    p = jnp.exp(s - m_new)                                       # f32 on VPU/EUP
    l_scr[...] = alpha * l_scr[...] + jnp.sum(p, axis=-1, keepdims=True)
    acc_scr[...] = alpha * acc_scr[...] + jnp.einsum(
        'nqk,nke->nqe', p.astype(v_ref.dtype), v_ref[...],
        preferred_element_type=f32)
    m_scr[...] = m_new

    @pl.when(kj == pl.num_programs(1) - 1)
    def _finalize():
        l = l_scr[...]
        inv = pl.reciprocal(l, approx=True)        # EUP slot (free next to exp)
        inv = inv * (2.0 - l * inv)                # one Newton step -> f32 parity
        # out_proj weight is folded into V'; only its bias remains.
        o_ref[...] = (acc_scr[...] * inv + bo_ref[...]).astype(o_ref.dtype)


# ----------------------------------------------------------------------------
# Parameters
# ----------------------------------------------------------------------------
def _xavier_uniform(key, out_dim, in_dim):
    bound = math.sqrt(6.0 / (in_dim + out_dim))
    return jax.random.uniform(key, (out_dim, in_dim), jnp.float32, -bound, bound)


def init_params(key, embed):
    """Raw params matching the module's initialize_weights(): xavier_uniform
    matrices, zero biases.  Stored pre-transposed to (in, out)."""
    k1, k2, k3, k4 = jax.random.split(key, 4)
    w1 = _xavier_uniform(k1, embed, embed)              # embed_1.fc.weight (out,in)
    w2 = _xavier_uniform(k2, embed, embed)              # embed_2.fc.weight
    in_proj = _xavier_uniform(k3, 3 * embed, embed)     # attn.in_proj_weight (3E,E)
    wo = _xavier_uniform(k4, embed, embed)              # attn.out_proj.weight
    wq, wk, wv = in_proj[:embed], in_proj[embed:2 * embed], in_proj[2 * embed:]
    zb = jnp.zeros((1, embed), jnp.float32)
    return dict(w1=w1.T, b1=zb, w2=w2.T, b2=zb,
                wq=wq.T, wk=wk.T, wv=wv.T, bq=zb, bk=zb, bv=zb,
                wo=wo.T, bo=zb)


def fold_params(p, embed):
    """Constant-fold embed_1/embed_2 + in_proj (+ out_proj on the V path) and
    the 1/sqrt(E) scale.  Mathematically identical to the unfused forward
    (exact because softmax weights sum to 1 and there is no key masking)."""
    scale = 1.0 / math.sqrt(embed)                     # head_dim == E (1 head)
    wq_f = (p['w2'] @ p['wq']) * scale
    bq_f = (p['b2'] @ p['wq'] + p['bq']) * scale
    wk_f = p['w1'] @ p['wk']
    bk_f = p['b1'] @ p['wk'] + p['bk']
    wv_f = p['w1'] @ p['wv']
    bv_f = p['b1'] @ p['wv'] + p['bv']
    return dict(wq=wq_f, bq=bq_f,
                wk=wk_f, bk=bk_f,
                wvo=wv_f @ p['wo'], bvo=bv_f @ p['wo'],    # out_proj folded into V
                bo=p['bo'])


# ----------------------------------------------------------------------------
# Tiling helpers
# ----------------------------------------------------------------------------
def _round_up(a, b):
    return ((a + b - 1) // b) * b


def _key_tile(n, max_tile=512):
    """Largest divisor of n that is <= max_tile and a multiple of 8 (or n)."""
    if n <= max_tile:
        return n
    for t in range(max_tile, 7, -1):
        if n % t == 0 and t % 8 == 0:
            return t
    return n       # no clean divisor; fall back to the whole key sequence


# ----------------------------------------------------------------------------
# Wrapper
# ----------------------------------------------------------------------------
def cross_attention_time_series(x, y, fused, *, tq=None, tk=None,
                                matmul_dtype=None):
    """x: (Lx, N, E), y: (Ly, N, E)  ->  (Ly, N, E), like the PyTorch model.

    matmul_dtype: dtype fed to the MXU (e.g. jnp.bfloat16 for 2x throughput on
    v6e/v7x). Softmax arithmetic and accumulation stay f32; output keeps x.dtype.
    """
    Lx, N, E = x.shape
    Ly = y.shape[0]
    out_dtype = x.dtype
    if matmul_dtype is None:
        matmul_dtype = x.dtype

    # ---- query / key tile sizes -------------------------------------------
    if tq is None:
        # Keep >= 2 grid steps whenever Ly allows (v7x megacore sharding),
        # cap the tile for VMEM, keep the sublane dim a multiple of 8.
        tq = max(8, min(256, _round_up(pl.cdiv(Ly, 2), 8)))
    if tk is None:
        tk = _key_tile(Lx)
    assert Lx % tk == 0, "key tile must divide Lx exactly (no key masking)"

    nq = pl.cdiv(Ly, tq)
    nk = Lx // tk
    Ly_pad = nq * tq

    # ---- one-time wrapper-side layout + hoisted K/V projection -------------
    # Single (L,N,E)->(N,L,E) transpose, fused by XLA; no in-kernel relayouts.
    x_b = jnp.transpose(x, (1, 0, 2))                       # (N, Lx, E)
    y_b = jnp.transpose(y, (1, 0, 2))                       # (N, Ly, E)
    # K / fused V·Wout projections computed exactly once (previously redone
    # inside every query-tile grid step).
    k_b = (jnp.einsum('nle,ef->nlf', x_b, fused['wk']) + fused['bk'])
    v_b = (jnp.einsum('nle,ef->nlf', x_b, fused['wvo']) + fused['bvo'])

    k_b = k_b.astype(matmul_dtype)
    v_b = v_b.astype(matmul_dtype)
    y_b = y_b.astype(matmul_dtype)
    wq = fused['wq'].astype(matmul_dtype)
    bq = fused['bq'].astype(jnp.float32)
    bo = fused['bo'].astype(jnp.float32)

    if Ly_pad != Ly:                                        # pad query rows only
        y_b = jnp.pad(y_b, ((0, 0), (0, Ly_pad - Ly), (0, 0)))

    # ---- VMEM budget / cost hint -------------------------------------------
    itm = jnp.dtype(matmul_dtype).itemsize
    out_itm = jnp.dtype(out_dtype).itemsize
    block_bytes = (N * tq * E * itm            # y tile
                   + 2 * N * tk * E * itm      # k + v tiles
                   + N * tq * E * out_itm)     # output tile
    scratch_bytes = N * tq * E * itm + N * tq * (E + 2) * 4
    temp_bytes = 3 * N * tq * tk * 4           # s / p / exp temporaries (f32)
    weight_bytes = E * E * itm + 2 * E * 4
    vmem_limit = int(min(max(2 * block_bytes + scratch_bytes + temp_bytes
                             + 2 * weight_bytes + (4 << 20), 16 << 20), 48 << 20))

    flops = (2 * N * Ly_pad * E * E            # Q projection (once per q tile)
             + 4 * N * Ly_pad * Lx * E)        # scores + context
    bytes_accessed = (N * Ly_pad * E * itm                 # queries
                      + 2 * N * Lx * E * itm * nq          # K/V re-read per q tile
                      + N * Ly_pad * E * out_itm           # output
                      + (E * E + 2 * E) * 4 * nq * nk)     # weights/biases
    cost = pl.CostEstimate(flops=int(flops),
                           transcendentals=int(N * Ly_pad * Lx),
                           bytes_accessed=int(bytes_accessed))

    # ---- pallas_call ---------------------------------------------------------
    grid_spec = pltpu.PrefetchScalarGridSpec(
        num_scalar_prefetch=0,
        grid=(nq, nk),
        in_specs=[
            pl.BlockSpec((N, tq, E), lambda i, j: (0, i, 0)),   # query tile
            pl.BlockSpec((N, tk, E), lambda i, j: (0, j, 0)),   # key tile
            pl.BlockSpec((N, tk, E), lambda i, j: (0, j, 0)),   # value tile
            pl.BlockSpec((E, E), lambda i, j: (0, 0)),          # fused Wq
            pl.BlockSpec((1, E), lambda i, j: (0, 0)),          # fused bq
            pl.BlockSpec((1, E), lambda i, j: (0, 0)),          # out_proj bias
        ],
        out_specs=pl.BlockSpec((N, tq, E), lambda i, j: (0, i, 0)),
        scratch_shapes=[
            pltpu.VMEM((N, tq, E), matmul_dtype),   # projected queries
            pltpu.VMEM((N, tq, 1), jnp.float32),    # running max
            pltpu.VMEM((N, tq, 1), jnp.float32),    # running normalizer
            pltpu.VMEM((N, tq, E), jnp.float32),    # running context
        ],
    )

    out_b = pl.pallas_call(
        _flash_cross_attn_kernel,
        out_shape=jax.ShapeDtypeStruct((N, Ly_pad, E), out_dtype),
        grid_spec=grid_spec,
        compiler_params=pltpu.CompilerParams(
            dimension_semantics=("parallel", "arbitrary"),
            vmem_limit_bytes=vmem_limit),
        cost_estimate=cost,
    )(y_b, k_b, v_b, wq, bq, bo)

    # back to the PyTorch (Ly, N, E) layout; drop query padding.
    return jnp.transpose(out_b, (1, 0, 2))[:Ly]


# ----------------------------------------------------------------------------
# Plain-JAX reference of the *unfused* forward (mirrors PyTorch) for validation
# ----------------------------------------------------------------------------
def _reference(x, y, p):
    def lin(a, w, b):
        return jnp.einsum('lne,ef->lnf', a, w) + b
    x_emb = lin(x, p['w1'], p['b1'])
    y_emb = lin(y, p['w2'], p['b2'])
    q = lin(y_emb, p['wq'], p['bq'])
    k = lin(x_emb, p['wk'], p['bk'])
    v = lin(x_emb, p['wv'], p['bv'])
    E = q.shape[-1]
    scores = jnp.einsum('qne,kne->nqk', q, k) / math.sqrt(E)
    attn = jax.nn.softmax(scores, axis=-1)
    ctx = jnp.einsum('nqk,kne->qne', attn, v)
    return jnp.einsum('qne,ef->qnf', ctx, p['wo']) + p['bo']


if __name__ == "__main__":
    E = 32      # input_dim == embed_size
    N = 2       # batch
    LX = 8      # key/value sequence length
    LY = 8      # query sequence length

    root = jax.random.PRNGKey(0)
    kx, ky, kp = jax.random.split(root, 3)
    x = jax.random.normal(kx, (LX, N, E), jnp.float32)
    y = jax.random.normal(ky, (LY, N, E), jnp.float32)

    raw = init_params(kp, E)
    fused = fold_params(raw, E)
    ref = _reference(x, y, raw)

    # f32 path: strict parity with the PyTorch-equivalent reference.
    out = jax.block_until_ready(cross_attention_time_series(x, y, fused))
    assert out.shape == (LY, N, E), out.shape
    assert jnp.allclose(out, ref, atol=1e-4, rtol=1e-4), \
        float(jnp.max(jnp.abs(out - ref)))

    # bf16-MXU path: same kernel, bf16 matmul operands, f32 accumulation.
    out_bf = jax.block_until_ready(
        cross_attention_time_series(x, y, fused, matmul_dtype=jnp.bfloat16))
    assert out_bf.shape == (LY, N, E), out_bf.shape
    assert jnp.allclose(out_bf, ref, atol=5e-2, rtol=5e-2), \
        float(jnp.max(jnp.abs(out_bf - ref)))

    print("KERNEL_OK")
</pallas_src>

<mosaic_0001>
module attributes {stable_mosaic.version = 11 : i64} {
  func.func @_flash_cross_attn_kernel(%arg0: i32, %arg1: i32, %arg2: memref<2x8x32xf32, #tpu.memory_space<vmem>>, %arg3: memref<2x8x32xf32, #tpu.memory_space<vmem>>, %arg4: memref<2x8x32xf32, #tpu.memory_space<vmem>>, %arg5: memref<32x32xf32, #tpu.memory_space<vmem>>, %arg6: memref<1x32xf32, #tpu.memory_space<vmem>>, %arg7: memref<1x32xf32, #tpu.memory_space<vmem>>, %arg8: memref<2x8x32xf32, #tpu.memory_space<vmem>>, %arg9: memref<2x8x32xf32, #tpu.memory_space<vmem>>, %arg10: memref<2x8x1xf32, #tpu.memory_space<vmem>>, %arg11: memref<2x8x1xf32, #tpu.memory_space<vmem>>, %arg12: memref<2x8x32xf32, #tpu.memory_space<vmem>>) attributes {dimension_semantics = [#tpu.dimension_semantics<parallel>, #tpu.dimension_semantics<arbitrary>], iteration_bounds = array<i64: 1, 1>, scalar_prefetch = 0 : i64, scratch_operands = 4 : i64, tpu.core_type = #tpu.core_type<tc>, window_params = [{transform_indices = @transform_0, window_bounds = array<i64: 2, 8, 32>}, {transform_indices = @transform_1, window_bounds = array<i64: 2, 8, 32>}, {transform_indices = @transform_2, window_bounds = array<i64: 2, 8, 32>}, {pipeline_mode = #tpu.pipeline_mode<synchronous>, transform_indices = @transform_3, window_bounds = array<i64: 32, 32>}, {pipeline_mode = #tpu.pipeline_mode<synchronous>, transform_indices = @transform_4, window_bounds = array<i64: 1, 32>}, {pipeline_mode = #tpu.pipeline_mode<synchronous>, transform_indices = @transform_5, window_bounds = array<i64: 1, 32>}, {transform_indices = @transform_6, window_bounds = array<i64: 2, 8, 32>}]} {
    %c0_i32 = arith.constant 0 : i32
    %0 = arith.cmpi eq, %arg1, %c0_i32 : i32
    %1 = arith.extui %0 : i1 to i32
    %c0_i32_0 = arith.constant 0 : i32
    %2 = arith.cmpi ne, %1, %c0_i32_0 : i32
    scf.if %2 {
      %c0_32 = arith.constant 0 : index
      %c0_33 = arith.constant 0 : index
      %c0_34 = arith.constant 0 : index
      %32 = vector.load %arg2[%c0_32, %c0_33, %c0_34] : memref<2x8x32xf32, #tpu.memory_space<vmem>>, vector<2x8x32xf32>
      %c0_35 = arith.constant 0 : index
      %c0_36 = arith.constant 0 : index
      %33 = vector.load %arg5[%c0_35, %c0_36] : memref<32x32xf32, #tpu.memory_space<vmem>>, vector<32x32xf32>
      "tpu.trace_start"() <{level = 10 : i32, message = "nqe,ef->nqf"}> : () -> ()
      %cst_37 = arith.constant dense<0.000000e+00> : vector<2x8x32xf32>
      %34 = tpu.matmul %32, %33, %cst_37 {dimension_numbers = #tpu.dot_dimension_numbers<[2], [0], [0, 1], [1], [0, 0, 0, 1, 1, 1], [], []>} : vector<2x8x32xf32>, vector<32x32xf32>, vector<2x8x32xf32> -> vector<2x8x32xf32>
      "tpu.trace_stop"() : () -> ()
      %c0_38 = arith.constant 0 : index
      %c0_39 = arith.constant 0 : index
      %35 = vector.load %arg6[%c0_38, %c0_39] : memref<1x32xf32, #tpu.memory_space<vmem>>, vector<1x32xf32>
      %36 = vector.shape_cast %35 : vector<1x32xf32> to vector<1x1x32xf32>
      %37 = vector.broadcast %36 : vector<1x1x32xf32> to vector<2x8x32xf32>
      %38 = arith.addf %34, %37 : vector<2x8x32xf32>
      %c0_40 = arith.constant 0 : index
      %c0_41 = arith.constant 0 : index
      %c0_42 = arith.constant 0 : index
      %39 = vector.load %arg9[%c0_40, %c0_41, %c0_42] : memref<2x8x32xf32, #tpu.memory_space<vmem>>, vector<2x8x32xf32>
      tpu.vector_store %arg9[%c0_40, %c0_41, %c0_42], %38 {strides = array<i32>} : memref<2x8x32xf32, #tpu.memory_space<vmem>>, vector<2x8x32xf32>,
      %cst_43 = arith.constant 0xFF800000 : f32
      %40 = vector.broadcast %cst_43 : f32 to vector<2x8x1xf32>
      %c0_44 = arith.constant 0 : index
      %c0_45 = arith.constant 0 : index
      %c0_46 = arith.constant 0 : index
      %41 = vector.load %arg10[%c0_44, %c0_45, %c0_46] : memref<2x8x1xf32, #tpu.memory_space<vmem>>, vector<2x8x1xf32>
      tpu.vector_store %arg10[%c0_44, %c0_45, %c0_46], %40 {strides = array<i32>} : memref<2x8x1xf32, #tpu.memory_space<vmem>>, vector<2x8x1xf32>,
      %cst_47 = arith.constant 0.000000e+00 : f32
      %42 = vector.broadcast %cst_47 : f32 to vector<2x8x1xf32>
      %c0_48 = arith.constant 0 : index
      %c0_49 = arith.constant 0 : index
      %c0_50 = arith.constant 0 : index
      %43 = vector.load %arg11[%c0_48, %c0_49, %c0_50] : memref<2x8x1xf32, #tpu.memory_space<vmem>>, vector<2x8x1xf32>
      tpu.vector_store %arg11[%c0_48, %c0_49, %c0_50], %42 {strides = array<i32>} : memref<2x8x1xf32, #tpu.memory_space<vmem>>, vector<2x8x1xf32>,
      %cst_51 = arith.constant 0.000000e+00 : f32
      %44 = vector.broadcast %cst_51 : f32 to vector<2x8x32xf32>
      %c0_52 = arith.constant 0 : index
      %c0_53 = arith.constant 0 : index
      %c0_54 = arith.constant 0 : index
      %45 = vector.load %arg12[%c0_52, %c0_53, %c0_54] : memref<2x8x32xf32, #tpu.memory_space<vmem>>, vector<2x8x32xf32>
      tpu.vector_store %arg12[%c0_52, %c0_53, %c0_54], %44 {strides = array<i32>} : memref<2x8x32xf32, #tpu.memory_space<vmem>>, vector<2x8x32xf32>,
    } else {
    }
    %c0 = arith.constant 0 : index
    %c0_1 = arith.constant 0 : index
    %c0_2 = arith.constant 0 : index
    %3 = vector.load %arg9[%c0, %c0_1, %c0_2] : memref<2x8x32xf32, #tpu.memory_space<vmem>>, vector<2x8x32xf32>
    %c0_3 = arith.constant 0 : index
    %c0_4 = arith.constant 0 : index
    %c0_5 = arith.constant 0 : index
    %4 = vector.load %arg3[%c0_3, %c0_4, %c0_5] : memref<2x8x32xf32, #tpu.memory_space<vmem>>, vector<2x8x32xf32>
    "tpu.trace_start"() <{level = 10 : i32, message = "nqe,nke->nqk"}> : () -> ()
    %cst = arith.constant dense<0.000000e+00> : vector<2x8x8xf32>
    %5 = tpu.matmul %3, %4, %cst {dimension_numbers = #tpu.dot_dimension_numbers<[2], [2], [1], [1], [0, 0, 0, 1, 1, 1], [0], [0]>} : vector<2x8x32xf32>, vector<2x8x32xf32>, vector<2x8x8xf32> -> vector<2x8x8xf32>
    "tpu.trace_stop"() : () -> ()
    %c0_6 = arith.constant 0 : index
    %c0_7 = arith.constant 0 : index
    %c0_8 = arith.constant 0 : index
    %6 = vector.load %arg10[%c0_6, %c0_7, %c0_8] : memref<2x8x1xf32, #tpu.memory_space<vmem>>, vector<2x8x1xf32>
    %cst_9 = arith.constant dense<0xFF800000> : vector<2x8xf32>
    %7 = vector.multi_reduction <maximumf>, %5, %cst_9 [2] : vector<2x8x8xf32> to vector<2x8xf32>
    %8 = vector.shape_cast %7 : vector<2x8xf32> to vector<2x8x1xf32>
    %9 = arith.maximumf %6, %8 : vector<2x8x1xf32>
    %10 = arith.subf %6, %9 : vector<2x8x1xf32>
    %11 = math.exp %10 : vector<2x8x1xf32>
    %12 = vector.broadcast %9 : vector<2x8x1xf32> to vector<2x8x8xf32>
    %13 = arith.subf %5, %12 : vector<2x8x8xf32>
    %14 = math.exp %13 : vector<2x8x8xf32>
    %c0_10 = arith.constant 0 : index
    %c0_11 = arith.constant 0 : index
    %c0_12 = arith.constant 0 : index
    %15 = vector.load %arg11[%c0_10, %c0_11, %c0_12] : memref<2x8x1xf32, #tpu.memory_space<vmem>>, vector<2x8x1xf32>
    %16 = arith.mulf %11, %15 : vector<2x8x1xf32>
    %cst_13 = arith.constant dense<0.000000e+00> : vector<2x8xf32>
    %17 = vector.multi_reduction <add>, %14, %cst_13 [2] : vector<2x8x8xf32> to vector<2x8xf32>
    %18 = vector.shape_cast %17 : vector<2x8xf32> to vector<2x8x1xf32>
    %19 = arith.addf %16, %18 : vector<2x8x1xf32>
    %c0_14 = arith.constant 0 : index
    %c0_15 = arith.constant 0 : index
    %c0_16 = arith.constant 0 : index
    %20 = vector.load %arg11[%c0_14, %c0_15, %c0_16] : memref<2x8x1xf32, #tpu.memory_space<vmem>>, vector<2x8x1xf32>
    tpu.vector_store %arg11[%c0_14, %c0_15, %c0_16], %19 {strides = array<i32>} : memref<2x8x1xf32, #tpu.memory_space<vmem>>, vector<2x8x1xf32>,
    %c0_17 = arith.constant 0 : index
    %c0_18 = arith.constant 0 : index
    %c0_19 = arith.constant 0 : index
    %21 = vector.load %arg12[%c0_17, %c0_18, %c0_19] : memref<2x8x32xf32, #tpu.memory_space<vmem>>, vector<2x8x32xf32>
    %22 = vector.broadcast %11 : vector<2x8x1xf32> to vector<2x8x32xf32>
    %23 = arith.mulf %22, %21 : vector<2x8x32xf32>
    %c0_20 = arith.constant 0 : index
    %c0_21 = arith.constant 0 : index
    %c0_22 = arith.constant 0 : index
    %24 = vector.load %arg4[%c0_20, %c0_21, %c0_22] : memref<2x8x32xf32, #tpu.memory_space<vmem>>, vector<2x8x32xf32>
    "tpu.trace_start"() <{level = 10 : i32, message = "nqk,nke->nqe"}> : () -> ()
    %cst_23 = arith.constant dense<0.000000e+00> : vector<2x8x32xf32>
    %25 = tpu.matmul %14, %24, %cst_23 {dimension_numbers = #tpu.dot_dimension_numbers<[2], [1], [1], [2], [0, 0, 0, 1, 1, 2], [0], [0]>} : vector<2x8x8xf32>, vector<2x8x32xf32>, vector<2x8x32xf32> -> vector<2x8x32xf32>
    "tpu.trace_stop"() : () -> ()
    %26 = arith.addf %23, %25 : vector<2x8x32xf32>
    %c0_24 = arith.constant 0 : index
    %c0_25 = arith.constant 0 : index
    %c0_26 = arith.constant 0 : index
    %27 = vector.load %arg12[%c0_24, %c0_25, %c0_26] : memref<2x8x32xf32, #tpu.memory_space<vmem>>, vector<2x8x32xf32>
    tpu.vector_store %arg12[%c0_24, %c0_25, %c0_26], %26 {strides = array<i32>} : memref<2x8x32xf32, #tpu.memory_space<vmem>>, vector<2x8x32xf32>,
    %c0_27 = arith.constant 0 : index
    %c0_28 = arith.constant 0 : index
    %c0_29 = arith.constant 0 : index
    %28 = vector.load %arg10[%c0_27, %c0_28, %c0_29] : memref<2x8x1xf32, #tpu.memory_space<vmem>>, vector<2x8x1xf32>
    tpu.vector_store %arg10[%c0_27, %c0_28, %c0_29], %9 {strides = array<i32>} : memref<2x8x1xf32, #tpu.memory_space<vmem>>, vector<2x8x1xf32>,
    %c0_i32_30 = arith.constant 0 : i32
    %29 = arith.cmpi eq, %arg1, %c0_i32_30 : i32
    %30 = arith.extui %29 : i1 to i32
    %c0_i32_31 = arith.constant 0 : i32
    %31 = arith.cmpi ne, %30, %c0_i32_31 : i32
    scf.if %31 {
      %c0_32 = arith.constant 0 : index
      %c0_33 = arith.constant 0 : index
      %c0_34 = arith.constant 0 : index
      %32 = vector.load %arg11[%c0_32, %c0_33, %c0_34] : memref<2x8x1xf32, #tpu.memory_space<vmem>>, vector<2x8x1xf32>
      %33 = tpu.reciprocal %32 {approx = true} : vector<2x8x1xf32> -> vector<2x8x1xf32>
      %34 = arith.mulf %32, %33 : vector<2x8x1xf32>
      %cst_35 = arith.constant 2.000000e+00 : f32
      %35 = vector.broadcast %cst_35 : f32 to vector<2x8x1xf32>
      %36 = arith.subf %35, %34 : vector<2x8x1xf32>
      %37 = arith.mulf %33, %36 : vector<2x8x1xf32>
      %c0_36 = arith.constant 0 : index
      %c0_37 = arith.constant 0 : index
      %c0_38 = arith.constant 0 : index
      %38 = vector.load %arg12[%c0_36, %c0_37, %c0_38] : memref<2x8x32xf32, #tpu.memory_space<vmem>>, vector<2x8x32xf32>
      %39 = vector.broadcast %37 : vector<2x8x1xf32> to vector<2x8x32xf32>
      %40 = arith.mulf %38, %39 : vector<2x8x32xf32>
      %c0_39 = arith.constant 0 : index
      %c0_40 = arith.constant 0 : index
      %41 = vector.load %arg7[%c0_39, %c0_40] : memref<1x32xf32, #tpu.memory_space<vmem>>, vector<1x32xf32>
      %42 = vector.shape_cast %41 : vector<1x32xf32> to vector<1x1x32xf32>
      %43 = vector.broadcast %42 : vector<1x1x32xf32> to vector<2x8x32xf32>
      %44 = arith.addf %40, %43 : vector<2x8x32xf32>
      %c0_41 = arith.constant 0 : index
      %c0_42 = arith.constant 0 : index
      %c0_43 = arith.constant 0 : index
      %45 = vector.load %arg8[%c0_41, %c0_42, %c0_43] : memref<2x8x32xf32, #tpu.memory_space<vmem>>, vector<2x8x32xf32>
      tpu.vector_store %arg8[%c0_41, %c0_42, %c0_43], %44 {strides = array<i32>} : memref<2x8x32xf32, #tpu.memory_space<vmem>>, vector<2x8x32xf32>,
    } else {
    }
    return
  }
  func.func @transform_0(%arg0: i32, %arg1: i32) -> (i32, i32, i32) {
    %c0_i32 = arith.constant 0 : i32
    %c0_i32_0 = arith.constant 0 : i32
    %c0_i32_1 = arith.constant 0 : i32
    return %c0_i32, %arg0, %c0_i32_0 : i32, i32, i32
  }
  func.func @transform_1(%arg0: i32, %arg1: i32) -> (i32, i32, i32) {
    %c0_i32 = arith.constant 0 : i32
    %c0_i32_0 = arith.constant 0 : i32
    %c0_i32_1 = arith.constant 0 : i32
    return %c0_i32, %arg1, %c0_i32_0 : i32, i32, i32
  }
  func.func @transform_2(%arg0: i32, %arg1: i32) -> (i32, i32, i32) {
    %c0_i32 = arith.constant 0 : i32
    %c0_i32_0 = arith.constant 0 : i32
    %c0_i32_1 = arith.constant 0 : i32
    return %c0_i32, %arg1, %c0_i32_0 : i32, i32, i32
  }
  func.func @transform_3(%arg0: i32, %arg1: i32) -> (i32, i32) {
    %c0_i32 = arith.constant 0 : i32
    %c0_i32_0 = arith.constant 0 : i32
    %c0_i32_1 = arith.constant 0 : i32
    return %c0_i32, %c0_i32_0 : i32, i32
  }
  func.func @transform_4(%arg0: i32, %arg1: i32) -> (i32, i32) {
    %c0_i32 = arith.constant 0 : i32
    %c0_i32_0 = arith.constant 0 : i32
    %c0_i32_1 = arith.constant 0 : i32
    return %c0_i32, %c0_i32_0 : i32, i32
  }
  func.func @transform_5(%arg0: i32, %arg1: i32) -> (i32, i32) {
    %c0_i32 = arith.constant 0 : i32
    %c0_i32_0 = arith.constant 0 : i32
    %c0_i32_1 = arith.constant 0 : i32
    return %c0_i32, %c0_i32_0 : i32, i32
  }
  func.func @transform_6(%arg0: i32, %arg1: i32) -> (i32, i32, i32) {
    %c0_i32 = arith.constant 0 : i32
    %c0_i32_0 = arith.constant 0 : i32
    %c0_i32_1 = arith.constant 0 : i32
    return %c0_i32, %arg0, %c0_i32_0 : i32, i32, i32
  }
}

</mosaic_0001>

<llo_original>
// kernel: tpu_custom_call.1
$region0: #{tpu_custom_call.1}
  #allocation0 [shape = 'u32[]', space=smem, size = 0x4, offset = 0x4, fixed_abs, tag = 'smem constant byte address 0x4 - core index']
  #allocation1 [shape = 'u32[72,128]{1,0:T(1,128)}', space=vmem, size = 0x9000, scoped, tag = 'internal scratch']
  #allocation2 [shape = 'f32[2,8,32]{2,1,0:T(8,128)}', space=vmem, size = 0x2000, scoped, tag = 'scratch operand']
  #allocation3 [shape = 'f32[2,8,1]{2,1,0:T(8,128)}', space=vmem, size = 0x2000, scoped, tag = 'scratch operand']
  #allocation4 [shape = 'f32[2,8,1]{2,1,0:T(8,128)}', space=vmem, size = 0x2000, scoped, tag = 'scratch operand']
  #allocation5 [shape = 'f32[2,8,32]{2,1,0:T(8,128)}', space=vmem, size = 0x2000, scoped, tag = 'scratch operand']
  %s0 = inlined_call_operand.hbm [shape: f32[2,8,32], index: 0, kind: input, shape index: {}]
  %s1 = inlined_call_operand.hbm [shape: f32[2,8,32], index: 1, kind: input, shape index: {}]
  %s2 = inlined_call_operand.hbm [shape: f32[2,8,32], index: 2, kind: input, shape index: {}]
  %s3 = inlined_call_operand.hbm [shape: f32[32,32], index: 3, kind: input, shape index: {}]
  %s4 = inlined_call_operand.vmem [shape: f32[1,32], index: 4, kind: input, shape index: {}]
  %s5 = inlined_call_operand.vmem [shape: f32[1,32], index: 5, kind: input, shape index: {}]
  %s6 = inlined_call_operand.hbm [shape: f32[2,8,32], index: 6, kind: output, shape index: {}]
  %s7 = sld [smem:[#allocation0]]
  $region58: #{tpu_custom_call.1} parent=0
    _
  %s9 = ssub.s32 1, %s7
  %s10 = scalar_select 0, %s9, %s7
  $region1: #{tpu_custom_call.1} parent=0
    #allocation6 [shape = 'u8[8192]{0}', space=vmem, size = 0x2000, scoped, tag = 'input window, operand 0, single buffered']
    #allocation7 [shape = 's32[1]{0}', space=sflag, size = 0x4, scoped, tag = 'scoped memory for tpu_custom_call.1']
    #allocation8 [shape = 's32[1]{0}', space=sflag, size = 0x4, scoped, tag = 'scoped memory for tpu_custom_call.1']
    #allocation9 [shape = 'u8[8192]{0}', space=vmem, size = 0x2000, scoped, tag = 'input window, operand 1, single buffered']
    #allocation10 [shape = 's32[1]{0}', space=sflag, size = 0x4, scoped, tag = 'scoped memory for tpu_custom_call.1']
    #allocation11 [shape = 'u8[8192]{0}', space=vmem, size = 0x2000, scoped, tag = 'input window, operand 2, single buffered']
    #allocation12 [shape = 'u8[16384]{0}', space=vmem, size = 0x4000, scoped, tag = 'input window, operand 3, single buffered']
    #allocation13 [shape = 's32[1]{0}', space=sflag, size = 0x4, scoped, tag = 'scoped memory for tpu_custom_call.1']
    #allocation14 [shape = 'u8[8192]{0}', space=vmem, size = 0x2000, scoped, tag = 'output window, operand 0, single buffered']
    %11 = vsyncpa [#allocation7], 0
    %12 = vsyncpa [#allocation10], 0
    %13 = vsyncpa [#allocation13], 0
    %14 = vsyncpa [#allocation8], 0
    // Predicated region
    $region2: #{tpu_custom_call.1} parent=1 // pred_check
      _
    $region3: #{tpu_custom_call.1} parent=1 // pred_check_branch
      %16 = sbr.rel (0) target = $region5
    $region4: #{tpu_custom_call.1} parent=1 // pred_region
      %18 = vsyncadd [#allocation7], 0
      %s19 = sshll.u32 %s0, 4
      %s20 = int_to_ptr.hbm [resolvable:$true] %s19
      %s21 = sshll.u32 [#allocation6], 4
      %s22 = int_to_ptr.vmem [resolvable:$true] %s21
      %27 = dma.hbm_to_vmem [thread:$0]  %s20, 256, %s22, [#allocation7], 128, 128, 8
    $region5: #{tpu_custom_call.1} parent=1 // pred_fallthru
      _
    // Predicated region
    $region6: #{tpu_custom_call.1} parent=1 // pred_check
      _
    $region7: #{tpu_custom_call.1} parent=1 // pred_check_branch
      %29 = sbr.rel (0) target = $region9
    $region8: #{tpu_custom_call.1} parent=1 // pred_region
      %31 = vsyncadd [#allocation10], 0
      %s32 = sshll.u32 %s1, 4
      %s33 = int_to_ptr.hbm [resolvable:$true] %s32
      %s34 = sshll.u32 [#allocation9], 4
      %s35 = int_to_ptr.vmem [resolvable:$true] %s34
      %40 = dma.hbm_to_vmem [thread:$0]  %s33, 256, %s35, [#allocation10], 128, 128, 8
    $region9: #{tpu_custom_call.1} parent=1 // pred_fallthru
      _
    // Predicated region
    $region10: #{tpu_custom_call.1} parent=1 // pred_check
      _
    $region11: #{tpu_custom_call.1} parent=1 // pred_check_branch
      %42 = sbr.rel (0) target = $region13
    $region12: #{tpu_custom_call.1} parent=1 // pred_region
      %44 = vsyncadd [#allocation10], 0
      %s45 = sshll.u32 %s2, 4
      %s46 = int_to_ptr.hbm [resolvable:$true] %s45
      %s47 = sshll.u32 [#allocation11], 4
      %s48 = int_to_ptr.vmem [resolvable:$true] %s47
      %53 = dma.hbm_to_vmem [thread:$0]  %s46, 256, %s48, [#allocation10], 128, 128, 8
    $region13: #{tpu_custom_call.1} parent=1 // pred_fallthru
      _
    // Predicated region
    $region14: #{tpu_custom_call.1} parent=1 // pred_check
      _
    $region15: #{tpu_custom_call.1} parent=1 // pred_check_branch
      %55 = sbr.rel (0) target = $region17
    $region16: #{tpu_custom_call.1} parent=1 // pred_region
      %57 = vsyncadd [#allocation13], 0
      %s58 = sshll.u32 %s3, 4
      %s59 = int_to_ptr.hbm [resolvable:$true] %s58
      %s60 = sshll.u32 [#allocation12], 4
      %s61 = int_to_ptr.vmem [resolvable:$true] %s60
      %66 = dma.hbm_to_vmem [thread:$0]  %s59, 512, %s61, [#allocation13], 128, 128, 8
    $region17: #{tpu_custom_call.1} parent=1 // pred_fallthru
      _
    // Predicated region
    $region18: #{tpu_custom_call.1} parent=1 // pred_check
      _
    $region19: #{tpu_custom_call.1} parent=1 // pred_check_branch
      %68 = sbr.rel (0) target = $region21
    $region20: #{tpu_custom_call.1} parent=1 // pred_region
      _
    $region21: #{tpu_custom_call.1} parent=1 // pred_fallthru
      _
    // Predicated region
    $region22: #{tpu_custom_call.1} parent=1 // pred_check
      _
    $region23: #{tpu_custom_call.1} parent=1 // pred_check_branch
      %70 = sbr.rel (0) target = $region25
    $region24: #{tpu_custom_call.1} parent=1 // pred_region
      _
    $region25: #{tpu_custom_call.1} parent=1 // pred_fallthru
      _
    // Predicated region
    $region26: #{tpu_custom_call.1} parent=1 // pred_check
      _
    $region27: #{tpu_custom_call.1} parent=1 // pred_check_branch
      %72 = sbr.rel (0) target = $region29
    $region28: #{tpu_custom_call.1} parent=1 // pred_region
      %74 = dma.done [#allocation7], 256
    $region29: #{tpu_custom_call.1} parent=1 // pred_fallthru
      _
    // Predicated region
    $region30: #{tpu_custom_call.1} parent=1 // pred_check
      _
    $region31: #{tpu_custom_call.1} parent=1 // pred_check_branch
      %76 = sbr.rel (0) target = $region33
    $region32: #{tpu_custom_call.1} parent=1 // pred_region
      %78 = dma.done [#allocation10], 256
    $region33: #{tpu_custom_call.1} parent=1 // pred_fallthru
      _
    // Predicated region
    $region34: #{tpu_custom_call.1} parent=1 // pred_check
      _
    $region35: #{tpu_custom_call.1} parent=1 // pred_check_branch
      %80 = sbr.rel (0) target = $region37
    $region36: #{tpu_custom_call.1} parent=1 // pred_region
      %82 = dma.done [#allocation10], 256
    $region37: #{tpu_custom_call.1} parent=1 // pred_fallthru
      _
    // Predicated region
    $region38: #{tpu_custom_call.1} parent=1 // pred_check
      _
    $region39: #{tpu_custom_call.1} parent=1 // pred_check_branch
      %84 = sbr.rel (0) target = $region41
    $region40: #{tpu_custom_call.1} parent=1 // pred_region
      %86 = dma.done [#allocation13], 512
    $region41: #{tpu_custom_call.1} parent=1 // pred_fallthru
      _
    %p87 = scmp.eq.s32.totalorder 0, 0
    // Predicated region
    $region42: #{tpu_custom_call.1} parent=1 // pred_check
      %p88 = pneg %p87
    $region43: #{tpu_custom_call.1} parent=1 // pred_check_branch
      %90 = sbr.rel (%p88) target = $region45
    $region44: #{tpu_custom_call.1} parent=1 // pred_region
      %v91 = vld [vmem:[#allocation6] sm:$0xff]
      %v92 = vld [vmem:[#allocation6 + $0x8] sm:$0xff]
      %v93 = vld [vmem:[#allocation12] sm:$0xff]
      %v94 = vld [vmem:[#allocation12 + $0x8] sm:$0xff]
      %v95 = vld [vmem:[#allocation12 + $0x10] sm:$0xff]
      %v96 = vld [vmem:[#allocation12 + $0x18] sm:$0xff]
      %v97 = vld [vmem:[%s4] sm:$0x1]
      %v99 = vperm.slane %v97, 0
      %vm101 = vcmask 261120
      %v103 = vsel %vm101, %v91, 0
      %v106 = vsel %vm101, %v92, 0
      %108 = vmatpush.msra.mxu0 0.0
      %109 = vmatpush.msra.mxu0 0.0
      %110 = vmatpush.msra.mxu0 0.0
      %111 = vmatpush.msra.mxu0 0.0
      %112 = vmatpush.msra.mxu0 0.0
      %113 = vmatpush.msra.mxu0 0.0
      %114 = vmatpush.msra.mxu0 0.0
      %115 = vmatpush.msra.mxu0 0.0
      %116 = vmatpush.msra.mxu0 0.0
      %117 = vmatpush.msra.mxu0 0.0
      %118 = vmatpush.msra.mxu0 0.0
      %119 = vmatpush.msra.mxu0 0.0
      %120 = vmatpush.msra.mxu0 %v96
      %121 = vmatpush.msra.mxu0 %v95
      %122 = vmatpush.msra.mxu0 %v94
      %123 = vmatpush.msra.mxu0 %v93
      %124 = vmatmul.f32.gmra.mxu0 %v103
      %v125 = vpop.f32.mrf.mxu0
      %v126 = vadd.f32 %v99, %v125
      %127 = vmatmul.f32.gmra.mxu0 %v106
      %v128 = vpop.f32.mrf.mxu0
      %v129 = vadd.f32 %v99, %v128
      %130 = vdwg.mxu0
      %131 = vst.msk [vmem:[#allocation2] sm:$0xff] %vm101, %v126
      %132 = vst.msk [vmem:[#allocation2 + $0x8] sm:$0xff] %vm101, %v129
      %vm133 = vcmask 7168
      %134 = vst.msk [vmem:[#allocation3] sm:$0xff] %vm133, -inf
      %135 = vst.msk [vmem:[#allocation3 + $0x8] sm:$0xff] %vm133, -inf
      %136 = vst.msk [vmem:[#allocation4] sm:$0xff] %vm133, 0.0
      %137 = vst.msk [vmem:[#allocation4 + $0x8] sm:$0xff] %vm133, 0.0
      %138 = vst.msk [vmem:[#allocation5] sm:$0xff] %vm101, 0.0
      %139 = vst.msk [vmem:[#allocation5 + $0x8] sm:$0xff] %vm101, 0.0
    $region45: #{tpu_custom_call.1} parent=1 // pred_fallthru
      _
    %v140 = vld [vmem:[#allocation2] sm:$0xff]
    %v141 = vld [vmem:[#allocation2 + $0x8] sm:$0xff]
    %v142 = vld [vmem:[#allocation9] sm:$0xff]
    %v143 = vld [vmem:[#allocation9 + $0x8] sm:$0xff]
    %vm144 = vcmask 261120
    %v146 = vsel %vm144, %v140, 0
    %v149 = vsel %vm144, %v142, 0
    %151 = vmatpush.xpose.msra.mxu0 0.0
    %152 = vmatpush.xpose.msra.mxu0 0.0
    %153 = vmatpush.xpose.msra.mxu0 0.0
    %154 = vmatpush.xpose.msra.mxu0 0.0
    %155 = vmatpush.xpose.msra.mxu0 0.0
    %156 = vmatpush.xpose.msra.mxu0 0.0
    %157 = vmatpush.xpose.msra.mxu0 0.0
    %158 = vmatpush.xpose.msra.mxu0 0.0
    %159 = vmatpush.xpose.msra.mxu0 0.0
    %160 = vmatpush.xpose.msra.mxu0 0.0
    %161 = vmatpush.xpose.msra.mxu0 0.0
    %162 = vmatpush.xpose.msra.mxu0 0.0
    %163 = vmatpush.xpose.msra.mxu0 0.0
    %164 = vmatpush.xpose.msra.mxu0 0.0
    %165 = vmatpush.xpose.msra.mxu0 0.0
    %166 = vmatpush.xpose.msra.mxu0 %v149
    %167 = vmatmul.f32.gmra.mxu0 %v146
    %v168 = vpop.f32.mrf.mxu0
    %v169 = vadd.f32 0.0, %v168
    %170 = vdwg.mxu0
    %v172 = vsel %vm144, %v141, 0
    %v175 = vsel %vm144, %v143, 0
    %177 = vmatpush.xpose.msra.mxu0 0.0
    %178 = vmatpush.xpose.msra.mxu0 0.0
    %179 = vmatpush.xpose.msra.mxu0 0.0
    %180 = vmatpush.xpose.msra.mxu0 0.0
    %181 = vmatpush.xpose.msra.mxu0 0.0
    %182 = vmatpush.xpose.msra.mxu0 0.0
    %183 = vmatpush.xpose.msra.mxu0 0.0
    %184 = vmatpush.xpose.msra.mxu0 0.0
    %185 = vmatpush.xpose.msra.mxu0 0.0
    %186 = vmatpush.xpose.msra.mxu0 0.0
    %187 = vmatpush.xpose.msra.mxu0 0.0
    %188 = vmatpush.xpose.msra.mxu0 0.0
    %189 = vmatpush.xpose.msra.mxu0 0.0
    %190 = vmatpush.xpose.msra.mxu0 0.0
    %191 = vmatpush.xpose.msra.mxu0 0.0
    %192 = vmatpush.xpose.msra.mxu0 %v175
    %193 = vmatmul.f32.gmra.mxu0 %v172
    %v194 = vpop.f32.mrf.mxu0
    %v195 = vadd.f32 0.0, %v194
    %196 = vdwg.mxu0
    %v197 = vld [vmem:[#allocation3] sm:$0xff]
    %v198 = vld [vmem:[#allocation3 + $0x8] sm:$0xff]
    %vm199 = vcmask 64512
    %v200 = vsel %vm199, %v169, -inf
    %201 = vmax.xlane.f32.xlu0 %v200
    %v202 = vpop.xlane.xlu0 %201
    %v203 = vsel %vm199, %v195, -inf
    %204 = vmax.xlane.f32.xlu0 %v203
    %v205 = vpop.xlane.xlu0 %204
    %v206 = vmax.f32 %v197, %v202
    %v207 = vmax.f32 %v198, %v205
    %v208 = vsub.f32 %v197, %v206
    %v209 = vsub.f32 %v198, %v207
    %v210 = vmul.f32 %v208, 1.442695
    %v211 = vpow.pop %v210
    %v212 = vmul.f32 %v209, 1.442695
    %v213 = vpow.pop %v212
    %215 = vset.pattern.permute.xlu0 0
    %216 = vperm.xlu0 %215, %v206
    %v217 = vpop.permute.xlu0 %216
    %220 = vset.pattern.permute.xlu0 0
    %221 = vperm.xlu0 %220, %v207
    %v222 = vpop.permute.xlu0 %221
    %v224 = vsub.f32 %v169, %v217
    %v225 = vsub.f32 %v195, %v222
    %v226 = vmul.f32 %v224, 1.442695
    %v227 = vpow.pop %v226
    %v228 = vmul.f32 %v225, 1.442695
    %v229 = vpow.pop %v228
    %v230 = vld [vmem:[#allocation4] sm:$0xff]
    %v231 = vld [vmem:[#allocation4 + $0x8] sm:$0xff]
    %v232 = vmul.f32 %v211, %v230
    %v233 = vmul.f32 %v213, %v231
    %v234 = vsel %vm199, %v227, 0.0
    %235 = vadd.xlane.f32.xlu0 %v234
    %v236 = vpop.xlane.xlu0 %235
    %v237 = vsel %vm199, %v229, 0.0
    %238 = vadd.xlane.f32.xlu0 %v237
    %v239 = vpop.xlane.xlu0 %238
    %v240 = vadd.f32 %v232, %v236
    %v241 = vadd.f32 %v233, %v239
    %vm242 = vcmask 7168
    %243 = vst.msk [vmem:[#allocation4] sm:$0xff] %vm242, %v240
    %244 = vst.msk [vmem:[#allocation4 + $0x8] sm:$0xff] %vm242, %v241
    %v245 = vld [vmem:[#allocation5] sm:$0xff]
    %v246 = vld [vmem:[#allocation5 + $0x8] sm:$0xff]
    %248 = vset.pattern.permute.xlu0 0
    %249 = vperm.xlu0 %248, %v211
    %v250 = vpop.permute.xlu0 %249
    %253 = vset.pattern.permute.xlu0 0
    %254 = vperm.xlu0 %253, %v213
    %v255 = vpop.permute.xlu0 %254
    %v257 = vmul.f32 %v250, %v245
    %v258 = vmul.f32 %v255, %v246
    %v259 = vld [vmem:[#allocation11] sm:$0xff]
    %v260 = vld [vmem:[#allocation11 + $0x8] sm:$0xff]
    %v262 = vsel %vm199, %v227, 0
    %264 = vmatpush.msra.mxu0 0.0
    %265 = vmatpush.msra.mxu0 0.0
    %266 = vmatpush.msra.mxu0 0.0
    %267 = vmatpush.msra.mxu0 0.0
    %268 = vmatpush.msra.mxu0 0.0
    %269 = vmatpush.msra.mxu0 0.0
    %270 = vmatpush.msra.mxu0 0.0
    %271 = vmatpush.msra.mxu0 0.0
    %272 = vmatpush.msra.mxu0 0.0
    %273 = vmatpush.msra.mxu0 0.0
    %274 = vmatpush.msra.mxu0 0.0
    %275 = vmatpush.msra.mxu0 0.0
    %276 = vmatpush.msra.mxu0 0.0
    %277 = vmatpush.msra.mxu0 0.0
    %278 = vmatpush.msra.mxu0 0.0
    %279 = vmatpush.msra.mxu0 %v259
    %280 = vmatmul.f32.gmra.mxu0 %v262
    %v281 = vpop.f32.mrf.mxu0
    %v282 = vadd.f32 0.0, %v281
    %283 = vdwg.mxu0
    %v285 = vsel %vm199, %v229, 0
    %287 = vmatpush.msra.mxu0 0.0
    %288 = vmatpush.msra.mxu0 0.0
    %289 = vmatpush.msra.mxu0 0.0
    %290 = vmatpush.msra.mxu0 0.0
    %291 = vmatpush.msra.mxu0 0.0
    %292 = vmatpush.msra.mxu0 0.0
    %293 = vmatpush.msra.mxu0 0.0
    %294 = vmatpush.msra.mxu0 0.0
    %295 = vmatpush.msra.mxu0 0.0
    %296 = vmatpush.msra.mxu0 0.0
    %297 = vmatpush.msra.mxu0 0.0
    %298 = vmatpush.msra.mxu0 0.0
    %299 = vmatpush.msra.mxu0 0.0
    %300 = vmatpush.msra.mxu0 0.0
    %301 = vmatpush.msra.mxu0 0.0
    %302 = vmatpush.msra.mxu0 %v260
    %303 = vmatmul.f32.gmra.mxu0 %v285
    %v304 = vpop.f32.mrf.mxu0
    %v305 = vadd.f32 0.0, %v304
    %306 = vdwg.mxu0
    %v307 = vadd.f32 %v257, %v282
    %v308 = vadd.f32 %v258, %v305
    %309 = vst.msk [vmem:[#allocation5] sm:$0xff] %vm144, %v307
    %310 = vst.msk [vmem:[#allocation5 + $0x8] sm:$0xff] %vm144, %v308
    %311 = vst.msk [vmem:[#allocation3] sm:$0xff] %vm242, %v206
    %312 = vst.msk [vmem:[#allocation3 + $0x8] sm:$0xff] %vm242, %v207
    // Predicated region
    $region46: #{tpu_custom_call.1} parent=1 // pred_check
      %p313 = pneg %p87
    $region47: #{tpu_custom_call.1} parent=1 // pred_check_branch
      %315 = sbr.rel (%p313) target = $region49
    $region48: #{tpu_custom_call.1} parent=1 // pred_region
      %v316 = vld [vmem:[#allocation4] sm:$0xff]
      %v317 = vld [vmem:[#allocation4 + $0x8] sm:$0xff]
      %v318 = vrcp.pop %v316
      %v319 = vrcp.pop %v317
      %v320 = vmul.f32 %v316, %v318
      %v321 = vmul.f32 %v317, %v319
      %v322 = vsub.f32 2.0, %v320
      %v323 = vsub.f32 2.0, %v321
      %v324 = vmul.f32 %v318, %v322
      %v325 = vmul.f32 %v319, %v323
      %v326 = vld [vmem:[#allocation5] sm:$0xff]
      %v327 = vld [vmem:[#allocation5 + $0x8] sm:$0xff]
      %329 = vset.pattern.permute.xlu0 0
      %330 = vperm.xlu0 %329, %v324
      %v331 = vpop.permute.xlu0 %330
      %334 = vset.pattern.permute.xlu0 0
      %335 = vperm.xlu0 %334, %v325
      %v336 = vpop.permute.xlu0 %335
      %v338 = vmul.f32 %v326, %v331
      %v339 = vmul.f32 %v327, %v336
      %v340 = vld [vmem:[%s5] sm:$0x1]
      %v342 = vperm.slane %v340, 0
      %v344 = vadd.f32 %v338, %v342
      %v345 = vadd.f32 %v339, %v342
      %346 = vst.msk [vmem:[#allocation14] sm:$0xff] %vm144, %v344
      %347 = vst.msk [vmem:[#allocation14 + $0x8] sm:$0xff] %vm144, %v345
    $region49: #{tpu_custom_call.1} parent=1 // pred_fallthru
      _
    // Predicated region
    $region50: #{tpu_custom_call.1} parent=1 // pred_check
      _
    $region51: #{tpu_custom_call.1} parent=1 // pred_check_branch
      %349 = sbr.rel (0) target = $region53
    $region52: #{tpu_custom_call.1} parent=1 // pred_region
      %351 = vsyncadd [#allocation8], 0
      %s352 = sshll.u32 [#allocation14], 4
      %s353 = int_to_ptr.vmem [resolvable:$true] %s352
      %s354 = sshll.u32 %s6, 4
      %s355 = int_to_ptr.hbm [resolvable:$true] %s354
      %360 = dma.vmem_to_hbm [thread:$0]  %s353, 256, %s355, [#allocation8], 128, 128, 8
    $region53: #{tpu_custom_call.1} parent=1 // pred_fallthru
      _
    // Predicated region
    $region54: #{tpu_custom_call.1} parent=1 // pred_check
      _
    $region55: #{tpu_custom_call.1} parent=1 // pred_check_branch
      %362 = sbr.rel (0) target = $region57
    $region56: #{tpu_custom_call.1} parent=1 // pred_region
      %364 = dma.done [#allocation8], 256
    $region57: #{tpu_custom_call.1} parent=1 // pred_fallthru
      _
    %365 = vsyncpa [#allocation7], 1
    %366 = vsyncpa [#allocation10], 1
    %367 = vsyncpa [#allocation13], 1
    %368 = vsyncpa [#allocation8], 1

</llo_original>
